<compile_context>
chip_gen: v6e
topology: v6e:2x2x1
jax: 0.10.0
libtpu: 0.0.40
codegen_flags: <defaults>
</compile_context>

<pallas_src>
import jax
import jax.numpy as jnp
import numpy as np
from jax.experimental import pallas as pl
from jax.experimental.pallas import tpu as pltpu

EPS = 1e-5          # BatchNorm eps
DEFAULT_TM = 512    # pixels (lanes) per grid step; multiple of 128


def skip_kernel(x_ref, w_ref, c_ref, o_ref):
    """x_ref: (nin, TM)  w_ref: (nout, nin) (BN1 scale folded in)
    c_ref: (nout, 3) = [b1 | s2 | b2]  o_ref: (nout, TM)."""
    x = x_ref[...]                       # (nin, TM)  f32
    w = w_ref[...]                       # (nout, nin) f32
    c = c_ref[...]                       # (nout, 3)  f32
    nin = x.shape[0]

    # Tiny contraction on the VPU: y[o, p] = sum_i w[o, i] * x[i, p]
    acc = w[:, 0:1] * x[0:1, :]          # (nout, TM)
    for i in range(1, nin):
        acc = acc + w[:, i:i + 1] * x[i:i + 1, :]

    # conv (+ folded BN1 scale) + BN1 bias + ReLU
    y = jnp.maximum(acc + c[:, 0:1], 0.0)
    # BN2 affine
    y = y * c[:, 1:2] + c[:, 2:3]
    o_ref[...] = y.astype(o_ref.dtype)


def _bn_affine(bn_params):
    gamma, beta, r_mean, r_var = bn_params
    s = gamma / jnp.sqrt(r_var + EPS)
    b = beta - r_mean * s
    return s, b


def skip_connection_forward(x, conv_w, bn1, bn2, *, padding):
    """x: (N, nin, H, W) NCHW float32. conv_w: (nout, nin, 1, 1)."""
    N, nin, H, W = x.shape
    nout = conv_w.shape[0]
    stride, ksize, dil = 2, 1, 2

    H_out = (H + 2 * padding - dil * (ksize - 1) - 1) // stride + 1
    W_out = (W + 2 * padding - dil * (ksize - 1) - 1) // stride + 1
    R = N * H_out * W_out

    # Strided sampling of the zero-padded input (1x1 kernel => no neighborhood),
    # then channels-major / pixels-on-lane view: (nin, R).
    xp = jnp.pad(x, ((0, 0), (0, 0), (padding, padding), (padding, padding)))
    xs = xp[:, :, 0:stride * H_out:stride, 0:stride * W_out:stride]   # (N, nin, Ho, Wo)
    xs = jnp.transpose(xs, (1, 0, 2, 3)).reshape(nin, R)              # (nin, R)

    # Pixel (lane) tile size: big for throughput, clamped for tiny inputs.
    TM = min(DEFAULT_TM, pl.cdiv(R, 128) * 128)
    R_pad = pl.cdiv(R, TM) * TM
    xs = jnp.pad(xs, ((0, 0), (0, R_pad - R))).astype(jnp.float32)

    # Fold BN1 scale into the conv weight; pack remaining per-channel constants.
    s1, b1 = _bn_affine(bn1)
    s2, b2 = _bn_affine(bn2)
    w = (conv_w.reshape(nout, nin) * s1[:, None]).astype(jnp.float32)   # (nout, nin)
    consts = jnp.stack([b1, s2, b2], axis=1).astype(jnp.float32)        # (nout, 3)

    out = pl.pallas_call(
        skip_kernel,
        out_shape=jax.ShapeDtypeStruct((nout, R_pad), jnp.float32),
        grid=(R_pad // TM,),
        in_specs=[
            pl.BlockSpec((nin, TM), lambda i: (0, i)),     # activation stripe
            pl.BlockSpec((nout, nin), lambda i: (0, 0)),   # folded weight
            pl.BlockSpec((nout, 3), lambda i: (0, 0)),     # [b1, s2, b2]
        ],
        out_specs=pl.BlockSpec((nout, TM), lambda i: (0, i)),
        compiler_params=pltpu.CompilerParams(
            dimension_semantics=("parallel",)),
    )(xs, w, consts)

    out = out[:, :R].reshape(nout, N, H_out, W_out)
    return jnp.transpose(out, (1, 0, 2, 3))   # back to NCHW


def reference_forward(x, conv_w, bn1, bn2, *, padding):
    y = jax.lax.conv_general_dilated(
        x, conv_w, window_strides=(2, 2),
        padding=((padding, padding), (padding, padding)),
        rhs_dilation=(2, 2),
        dimension_numbers=("NCHW", "OIHW", "NCHW"))

    def bn(v, p):
        g, b, rm, rv = (t[None, :, None, None] for t in p)
        return (v - rm) / jnp.sqrt(rv + EPS) * g + b

    y = bn(y, bn1)
    y = jnp.maximum(y, 0.0)
    y = bn(y, bn2)
    return y


if __name__ == "__main__":
    key = jax.random.PRNGKey(0)
    keys = jax.random.split(key, 10)

    N, nin, H, W = 2, 4, 16, 16
    nout, padding = 8, 1

    x = jax.random.normal(keys[0], (N, nin, H, W), jnp.float32)
    conv_w = jax.random.normal(keys[1], (nout, nin, 1, 1), jnp.float32) * 0.1

    bn1 = (jax.random.uniform(keys[2], (nout,), minval=0.5, maxval=1.5),
           jax.random.normal(keys[3], (nout,)) * 0.1,
           jax.random.normal(keys[4], (nout,)) * 0.1,
           jax.random.uniform(keys[5], (nout,), minval=0.5, maxval=1.5))
    bn2 = (jax.random.uniform(keys[6], (nout,), minval=0.5, maxval=1.5),
           jax.random.normal(keys[7], (nout,)) * 0.1,
           jax.random.normal(keys[8], (nout,)) * 0.1,
           jax.random.uniform(keys[9], (nout,), minval=0.5, maxval=1.5))

    out = skip_connection_forward(x, conv_w, bn1, bn2, padding=padding)
    out = jax.block_until_ready(out)

    ref = reference_forward(x, conv_w, bn1, bn2, padding=padding)
    np.testing.assert_allclose(np.asarray(out), np.asarray(ref), rtol=1e-5, atol=1e-5)

    print("KERNEL_OK")
</pallas_src>

<mosaic_0001>
module attributes {stable_mosaic.version = 11 : i64} {
  func.func @skip_kernel(%arg0: i32, %arg1: memref<4x256xf32, #tpu.memory_space<vmem>>, %arg2: memref<8x4xf32, #tpu.memory_space<vmem>>, %arg3: memref<8x3xf32, #tpu.memory_space<vmem>>, %arg4: memref<8x256xf32, #tpu.memory_space<vmem>>) attributes {dimension_semantics = [#tpu.dimension_semantics<parallel>], iteration_bounds = array<i64: 1>, scalar_prefetch = 0 : i64, scratch_operands = 0 : i64, tpu.core_type = #tpu.core_type<tc>, window_params = [{transform_indices = @transform_0, window_bounds = array<i64: 4, 256>}, {pipeline_mode = #tpu.pipeline_mode<synchronous>, transform_indices = @transform_1, window_bounds = array<i64: 8, 4>}, {pipeline_mode = #tpu.pipeline_mode<synchronous>, transform_indices = @transform_2, window_bounds = array<i64: 8, 3>}, {transform_indices = @transform_3, window_bounds = array<i64: 8, 256>}]} {
    %c0 = arith.constant 0 : index
    %c0_0 = arith.constant 0 : index
    %0 = vector.load %arg1[%c0, %c0_0] : memref<4x256xf32, #tpu.memory_space<vmem>>, vector<4x256xf32>
    %c0_1 = arith.constant 0 : index
    %c0_2 = arith.constant 0 : index
    %1 = vector.load %arg2[%c0_1, %c0_2] : memref<8x4xf32, #tpu.memory_space<vmem>>, vector<8x4xf32>
    %c0_3 = arith.constant 0 : index
    %c0_4 = arith.constant 0 : index
    %2 = vector.load %arg3[%c0_3, %c0_4] : memref<8x3xf32, #tpu.memory_space<vmem>>, vector<8x3xf32>
    %3 = vector.extract_strided_slice %1 {offsets = [0, 0], sizes = [8, 1], strides = [1, 1]} : vector<8x4xf32> to vector<8x1xf32>
    %4 = vector.extract_strided_slice %0 {offsets = [0, 0], sizes = [1, 256], strides = [1, 1]} : vector<4x256xf32> to vector<1x256xf32>
    %5 = vector.broadcast %3 : vector<8x1xf32> to vector<8x256xf32>
    %6 = vector.broadcast %4 : vector<1x256xf32> to vector<8x256xf32>
    %7 = arith.mulf %5, %6 : vector<8x256xf32>
    %8 = vector.extract_strided_slice %1 {offsets = [0, 1], sizes = [8, 1], strides = [1, 1]} : vector<8x4xf32> to vector<8x1xf32>
    %9 = vector.extract_strided_slice %0 {offsets = [1, 0], sizes = [1, 256], strides = [1, 1]} : vector<4x256xf32> to vector<1x256xf32>
    %10 = vector.broadcast %8 : vector<8x1xf32> to vector<8x256xf32>
    %11 = vector.broadcast %9 : vector<1x256xf32> to vector<8x256xf32>
    %12 = arith.mulf %10, %11 : vector<8x256xf32>
    %13 = arith.addf %7, %12 : vector<8x256xf32>
    %14 = vector.extract_strided_slice %1 {offsets = [0, 2], sizes = [8, 1], strides = [1, 1]} : vector<8x4xf32> to vector<8x1xf32>
    %15 = vector.extract_strided_slice %0 {offsets = [2, 0], sizes = [1, 256], strides = [1, 1]} : vector<4x256xf32> to vector<1x256xf32>
    %16 = vector.broadcast %14 : vector<8x1xf32> to vector<8x256xf32>
    %17 = vector.broadcast %15 : vector<1x256xf32> to vector<8x256xf32>
    %18 = arith.mulf %16, %17 : vector<8x256xf32>
    %19 = arith.addf %13, %18 : vector<8x256xf32>
    %20 = vector.extract_strided_slice %1 {offsets = [0, 3], sizes = [8, 1], strides = [1, 1]} : vector<8x4xf32> to vector<8x1xf32>
    %21 = vector.extract_strided_slice %0 {offsets = [3, 0], sizes = [1, 256], strides = [1, 1]} : vector<4x256xf32> to vector<1x256xf32>
    %22 = vector.broadcast %20 : vector<8x1xf32> to vector<8x256xf32>
    %23 = vector.broadcast %21 : vector<1x256xf32> to vector<8x256xf32>
    %24 = arith.mulf %22, %23 : vector<8x256xf32>
    %25 = arith.addf %19, %24 : vector<8x256xf32>
    %26 = vector.extract_strided_slice %2 {offsets = [0, 0], sizes = [8, 1], strides = [1, 1]} : vector<8x3xf32> to vector<8x1xf32>
    %27 = vector.broadcast %26 : vector<8x1xf32> to vector<8x256xf32>
    %28 = arith.addf %25, %27 : vector<8x256xf32>
    %cst = arith.constant 0.000000e+00 : f32
    %29 = vector.broadcast %cst : f32 to vector<8x256xf32>
    %30 = arith.maximumf %28, %29 : vector<8x256xf32>
    %31 = vector.extract_strided_slice %2 {offsets = [0, 1], sizes = [8, 1], strides = [1, 1]} : vector<8x3xf32> to vector<8x1xf32>
    %32 = vector.broadcast %31 : vector<8x1xf32> to vector<8x256xf32>
    %33 = arith.mulf %30, %32 : vector<8x256xf32>
    %34 = vector.extract_strided_slice %2 {offsets = [0, 2], sizes = [8, 1], strides = [1, 1]} : vector<8x3xf32> to vector<8x1xf32>
    %35 = vector.broadcast %34 : vector<8x1xf32> to vector<8x256xf32>
    %36 = arith.addf %33, %35 : vector<8x256xf32>
    %c0_5 = arith.constant 0 : index
    %c0_6 = arith.constant 0 : index
    %37 = vector.load %arg4[%c0_5, %c0_6] : memref<8x256xf32, #tpu.memory_space<vmem>>, vector<8x256xf32>
    tpu.vector_store %arg4[%c0_5, %c0_6], %36 {strides = array<i32>} : memref<8x256xf32, #tpu.memory_space<vmem>>, vector<8x256xf32>,
    return
  }
  func.func @transform_0(%arg0: i32) -> (i32, i32) {
    %c0_i32 = arith.constant 0 : i32
    %c0_i32_0 = arith.constant 0 : i32
    return %c0_i32, %arg0 : i32, i32
  }
  func.func @transform_1(%arg0: i32) -> (i32, i32) {
    %c0_i32 = arith.constant 0 : i32
    %c0_i32_0 = arith.constant 0 : i32
    %c0_i32_1 = arith.constant 0 : i32
    return %c0_i32, %c0_i32_0 : i32, i32
  }
  func.func @transform_2(%arg0: i32) -> (i32, i32) {
    %c0_i32 = arith.constant 0 : i32
    %c0_i32_0 = arith.constant 0 : i32
    %c0_i32_1 = arith.constant 0 : i32
    return %c0_i32, %c0_i32_0 : i32, i32
  }
  func.func @transform_3(%arg0: i32) -> (i32, i32) {
    %c0_i32 = arith.constant 0 : i32
    %c0_i32_0 = arith.constant 0 : i32
    return %c0_i32, %arg0 : i32, i32
  }
}

</mosaic_0001>

<llo_original>
// kernel: tpu_custom_call.1
$region0: #{tpu_custom_call.1}
  #allocation0 [shape = 'u32[]', space=smem, size = 0x4, offset = 0x4, fixed_abs, tag = 'smem constant byte address 0x4 - core index']
  #allocation1 [shape = 'u32[144,128]{1,0:T(1,128)}', space=vmem, size = 0x12000, scoped, tag = 'internal scratch']
  %s0 = inlined_call_operand.vmem [shape: f32[4,256], index: 0, kind: input, shape index: {}]
  %s1 = inlined_call_operand.vmem [shape: f32[8,4], index: 1, kind: input, shape index: {}]
  %s2 = inlined_call_operand.vmem [shape: f32[8,3], index: 2, kind: input, shape index: {}]
  %s3 = inlined_call_operand.hbm [shape: f32[8,256], index: 3, kind: output, shape index: {}]
  %s4 = sld [smem:[#allocation0]]
  $region22: #{tpu_custom_call.1} parent=0
    _
  %s6 = ssub.s32 1, %s4
  %s7 = scalar_select 0, %s6, %s4
  $region1: #{tpu_custom_call.1} parent=0
    #allocation2 [shape = 'u8[8192]{0}', space=vmem, size = 0x2000, scoped, tag = 'output window, operand 0, single buffered']
    #allocation3 [shape = 's32[1]{0}', space=sflag, size = 0x4, scoped, tag = 'scoped memory for tpu_custom_call.1']
    %8 = vsyncpa [#allocation3], 0
    // Predicated region
    $region2: #{tpu_custom_call.1} parent=1 // pred_check
      _
    $region3: #{tpu_custom_call.1} parent=1 // pred_check_branch
      %10 = sbr.rel (0) target = $region5
    $region4: #{tpu_custom_call.1} parent=1 // pred_region
      _
    $region5: #{tpu_custom_call.1} parent=1 // pred_fallthru
      _
    // Predicated region
    $region6: #{tpu_custom_call.1} parent=1 // pred_check
      _
    $region7: #{tpu_custom_call.1} parent=1 // pred_check_branch
      %12 = sbr.rel (0) target = $region9
    $region8: #{tpu_custom_call.1} parent=1 // pred_region
      _
    $region9: #{tpu_custom_call.1} parent=1 // pred_fallthru
      _
    // Predicated region
    $region10: #{tpu_custom_call.1} parent=1 // pred_check
      _
    $region11: #{tpu_custom_call.1} parent=1 // pred_check_branch
      %14 = sbr.rel (0) target = $region13
    $region12: #{tpu_custom_call.1} parent=1 // pred_region
      _
    $region13: #{tpu_custom_call.1} parent=1 // pred_fallthru
      _
    %v15 = vld [vmem:[%s0] sm:$0xff]
    %v16 = vld [vmem:[%s1] sm:$0xff]
    %v17 = vld [vmem:[%s2] sm:$0xff]
    %19 = vset.pattern.permute.xlu0 0
    %20 = vperm.xlu0 %19, %v16
    %v21 = vpop.permute.xlu0 %20
    %v24 = vlaneseq
    %v25 = vshrl.u32 %v24, 7
    %v26 = vsub.s32 0, %v25
    %v27 = vrot.slane %v15, %v26
    %v28 = vlaneseq
    %v29 = vshrl.u32 %v28, 7
    %v30 = vsub.s32 4, %v29
    %v31 = vrot.slane %v15, %v30
    %v34 = vlaneseq
    %v35 = vshrl.u32 %v34, 7
    %v36 = vsub.s32 0, %v35
    %v37 = vrot.slane %v27, %v36
    %v38 = vlaneseq
    %v39 = vshrl.u32 %v38, 7
    %v40 = vsub.s32 0, %v39
    %v41 = vrot.slane %v31, %v40
    %v42 = vmul.f32 %v21, %v37
    %v43 = vmul.f32 %v21, %v41
    %44 = vset.pattern.permute.xlu0 1
    %45 = vperm.xlu0 %44, %v16
    %v46 = vpop.permute.xlu0 %45
    %v48 = vlaneseq
    %v49 = vshrl.u32 %v48, 7
    %v50 = vsub.s32 1, %v49
    %v51 = vrot.slane %v15, %v50
    %v52 = vlaneseq
    %v53 = vshrl.u32 %v52, 7
    %v54 = vsub.s32 5, %v53
    %v55 = vrot.slane %v15, %v54
    %v58 = vlaneseq
    %v59 = vshrl.u32 %v58, 7
    %v60 = vsub.s32 1, %v59
    %v61 = vrot.slane %v51, %v60
    %v62 = vlaneseq
    %v63 = vshrl.u32 %v62, 7
    %v64 = vsub.s32 1, %v63
    %v65 = vrot.slane %v55, %v64
    %v66 = vmul.f32 %v46, %v61
    %v67 = vmul.f32 %v46, %v65
    %v68 = vadd.f32 %v42, %v66
    %v69 = vadd.f32 %v43, %v67
    %70 = vset.pattern.permute.xlu0 2
    %71 = vperm.xlu0 %70, %v16
    %v72 = vpop.permute.xlu0 %71
    %v74 = vlaneseq
    %v75 = vshrl.u32 %v74, 7
    %v76 = vsub.s32 2, %v75
    %v77 = vrot.slane %v15, %v76
    %v78 = vlaneseq
    %v79 = vshrl.u32 %v78, 7
    %v80 = vsub.s32 6, %v79
    %v81 = vrot.slane %v15, %v80
    %v84 = vlaneseq
    %v85 = vshrl.u32 %v84, 7
    %v86 = vsub.s32 2, %v85
    %v87 = vrot.slane %v77, %v86
    %v88 = vlaneseq
    %v89 = vshrl.u32 %v88, 7
    %v90 = vsub.s32 2, %v89
    %v91 = vrot.slane %v81, %v90
    %v92 = vmul.f32 %v72, %v87
    %v93 = vmul.f32 %v72, %v91
    %v94 = vadd.f32 %v68, %v92
    %v95 = vadd.f32 %v69, %v93
    %96 = vset.pattern.permute.xlu0 3
    %97 = vperm.xlu0 %96, %v16
    %v98 = vpop.permute.xlu0 %97
    %v100 = vlaneseq
    %v101 = vshrl.u32 %v100, 7
    %v102 = vsub.s32 3, %v101
    %v103 = vrot.slane %v15, %v102
    %v104 = vlaneseq
    %v105 = vshrl.u32 %v104, 7
    %v106 = vsub.s32 7, %v105
    %v107 = vrot.slane %v15, %v106
    %v110 = vlaneseq
    %v111 = vshrl.u32 %v110, 7
    %v112 = vsub.s32 3, %v111
    %v113 = vrot.slane %v103, %v112
    %v114 = vlaneseq
    %v115 = vshrl.u32 %v114, 7
    %v116 = vsub.s32 3, %v115
    %v117 = vrot.slane %v107, %v116
    %v118 = vmul.f32 %v98, %v113
    %v119 = vmul.f32 %v98, %v117
    %v120 = vadd.f32 %v94, %v118
    %v121 = vadd.f32 %v95, %v119
    %123 = vset.pattern.permute.xlu0 0
    %124 = vperm.xlu0 %123, %v17
    %v125 = vpop.permute.xlu0 %124
    %v127 = vadd.f32 %v120, %v125
    %v128 = vadd.f32 %v121, %v125
    %v129 = vmax.f32 %v127, 0.0
    %v130 = vmax.f32 %v128, 0.0
    %131 = vset.pattern.permute.xlu0 1
    %132 = vperm.xlu0 %131, %v17
    %v133 = vpop.permute.xlu0 %132
    %v135 = vmul.f32 %v129, %v133
    %v136 = vmul.f32 %v130, %v133
    %137 = vset.pattern.permute.xlu0 2
    %138 = vperm.xlu0 %137, %v17
    %v139 = vpop.permute.xlu0 %138
    %v141 = vadd.f32 %v135, %v139
    %v142 = vadd.f32 %v136, %v139
    %143 = vst [vmem:[#allocation2] sm:$0xff] %v141
    %144 = vst [vmem:[#allocation2 + $0x8] sm:$0xff] %v142
    // Predicated region
    $region14: #{tpu_custom_call.1} parent=1 // pred_check
      _
    $region15: #{tpu_custom_call.1} parent=1 // pred_check_branch
      %146 = sbr.rel (0) target = $region17
    $region16: #{tpu_custom_call.1} parent=1 // pred_region
      %s148 = ssub.s32 256, 256
      %149 = vsyncadd [#allocation3], %s148
      %s151 = sshll.u32 [#allocation2], 4
      %s152 = int_to_ptr.vmem [resolvable:$true] %s151
      %154 = dma.vmem_to_hbm [thread:$0]  %s152, 256, %s3, [#allocation3]
    $region17: #{tpu_custom_call.1} parent=1 // pred_fallthru
      _
    // Predicated region
    $region18: #{tpu_custom_call.1} parent=1 // pred_check
      _
    $region19: #{tpu_custom_call.1} parent=1 // pred_check_branch
      %156 = sbr.rel (0) target = $region21
    $region20: #{tpu_custom_call.1} parent=1 // pred_region
      %157 = dma.done [#allocation3], 256
    $region21: #{tpu_custom_call.1} parent=1 // pred_fallthru
      _
    %158 = vsyncpa [#allocation3], 1

</llo_original>
